<compile_context>
chip_gen: v7x
topology: tpu7x:2x2x1
jax: 0.10.0
libtpu: 0.0.40
codegen_flags: <defaults>
</compile_context>

<pallas_src>
import functools

import jax
import jax.numpy as jnp
from jax.experimental import pallas as pl
from jax.experimental.pallas import tpu as pltpu

EPS = 1e-5  # nn.LayerNorm default eps
LANES = 128


def _round_up(x, m):
    return (x + m - 1) // m * m


def _combine_kernel(f1_ref, f2_ref, wca_ref, wcb_ref, w2_ref, vec_ref, o_ref,
                    *, d_real):
    """One batch tile of the fused forward pass.

    wca/wcb : [f1d, 2*Dp] / [f2d, 2*Dp]   fused (fc1 || residual_proj) weights
    w2      : [Dp, Dp]                    fc2 weights (zero-padded)
    vec     : [8, 2*Dp] packed rows: 0=b1||br, 1=g1, 2=be1, 3=b2, 4=g2, 5=be2
    o_ref   : [tile_m, Dp]                lane-dense (padded) output
    """
    Dp = o_ref.shape[-1]

    f1 = f1_ref[...]
    f2 = f2_ref[...]

    bc  = vec_ref[0:1, :].astype(jnp.float32)        # (1, 2*Dp)  b1 || br
    g1  = vec_ref[1:2, :Dp].astype(jnp.float32)
    be1 = vec_ref[2:3, :Dp].astype(jnp.float32)
    b2  = vec_ref[3:4, :Dp].astype(jnp.float32)
    g2  = vec_ref[4:5, :Dp].astype(jnp.float32)
    be2 = vec_ref[5:6, :Dp].astype(jnp.float32)

    # lane mask over the real (unpadded) feature width; padded lanes are exact 0
    lane = jax.lax.broadcasted_iota(jnp.int32, (1, Dp), 1)
    mask = (lane < d_real).astype(jnp.float32)
    inv_d = 1.0 / float(d_real)

    def layernorm(x, gamma, beta):
        # x is exactly zero in padded lanes, so sums only see real features.
        mu = jnp.sum(x, axis=-1, keepdims=True) * inv_d
        xc = (x - mu) * mask
        var = jnp.sum(xc * xc, axis=-1, keepdims=True) * inv_d
        return xc * jax.lax.rsqrt(var + EPS) * gamma + beta

    # Fused fc1 || residual_proj of concat(f1, f2): split-K, wide-N matmul.
    comb = (jnp.dot(f1, wca_ref[...], preferred_element_type=jnp.float32)
            + jnp.dot(f2, wcb_ref[...], preferred_element_type=jnp.float32)
            + bc)                                     # (tile_m, 2*Dp) f32
    out = comb[:, :Dp]
    residual = comb[:, Dp:]

    out = layernorm(out, g1, be1)
    out = jnp.maximum(out, 0.0)
    # dropout1: identity (inference)

    out = jnp.dot(out.astype(w2_ref.dtype), w2_ref[...],
                  preferred_element_type=jnp.float32) + b2
    out = layernorm(out, g2, be2)
    # dropout2: identity (inference)

    o_ref[...] = jnp.maximum(out + residual, 0.0).astype(o_ref.dtype)


def combine_transcriptomics_patch_ctx(feat_1, feat_2, params, *, tile_m=None):
    """Pallas forward of CombineTranscriptomicsPatchCtx (inference mode).

    feat_1: [B, feat_1_dim], feat_2: [B, feat_2_dim]  ->  [B, feat_1_dim]
    """
    B, f1d = feat_1.shape
    _, f2d = feat_2.shape
    out_dim = f1d
    Dp = _round_up(out_dim, LANES)          # lane-dense padded hidden/output width

    if tile_m is None:
        tile_m = min(B, 512)                # big tiles amortize ~0.35us/step overhead
    assert B % tile_m == 0, "batch must be divisible by tile_m"

    (w1, b1, g1, be1, w2, b2, g2, be2, wr, br) = params
    dt = w1.dtype

    # --- weight prep (plain XLA ops, outside the kernel) -------------------
    def pad_cols(a):
        return jnp.pad(a, ((0, 0), (0, Dp - a.shape[-1])))

    w1p = pad_cols(w1)                                   # [in_dim, Dp]
    wrp = pad_cols(wr)                                   # [in_dim, Dp]
    wc = jnp.concatenate([w1p, wrp], axis=1)             # fused fc1 || residual
    wca, wcb = wc[:f1d], wc[f1d:]                        # split-K over (f1, f2)

    w2p = jnp.zeros((Dp, Dp), dt).at[:out_dim, :out_dim].set(w2)

    def vrow(v):
        return jnp.zeros((1, 2 * Dp), dt).at[0, :v.shape[-1]].set(v.reshape(-1))

    bc = (jnp.zeros((1, 2 * Dp), dt)
          .at[0, :out_dim].set(b1.reshape(-1))
          .at[0, Dp:Dp + out_dim].set(br.reshape(-1)))
    vec = jnp.concatenate(
        [bc, vrow(g1), vrow(be1), vrow(b2), vrow(g2), vrow(be2),
         jnp.zeros((2, 2 * Dp), dt)], axis=0)            # [8, 2*Dp] packed slab

    # --- pallas call --------------------------------------------------------
    grid = (B // tile_m,)
    full2d = lambda shape: pl.BlockSpec(shape, lambda i: (0, 0))

    out_padded = pl.pallas_call(
        functools.partial(_combine_kernel, d_real=out_dim),
        out_shape=jax.ShapeDtypeStruct((B, Dp), feat_1.dtype),
        grid_spec=pltpu.PrefetchScalarGridSpec(
            num_scalar_prefetch=0,
            grid=grid,
            in_specs=[
                pl.BlockSpec((tile_m, f1d), lambda i: (i, 0)),
                pl.BlockSpec((tile_m, f2d), lambda i: (i, 0)),
                full2d(wca.shape),   # grid-invariant weights
                full2d(wcb.shape),
                full2d(w2p.shape),
                full2d(vec.shape),   # packed bias / LayerNorm vectors
            ],
            out_specs=pl.BlockSpec((tile_m, Dp), lambda i: (i, 0)),
        ),
        compiler_params=pltpu.CompilerParams(
            dimension_semantics=("parallel",),       # batch tiles shard across TCs
            vmem_limit_bytes=64 * 1024 * 1024,       # headroom for large tile_m
        ),
    )(feat_1, feat_2, wca, wcb, w2p, vec)

    return out_padded[:, :out_dim]


# ---------------------------------------------------------------------------
# Reference + parameter init (pure JAX, mirrors the torch module)
# ---------------------------------------------------------------------------
def _layernorm_ref(x, gamma, beta):
    mu = jnp.mean(x, axis=-1, keepdims=True)
    var = jnp.mean((x - mu) ** 2, axis=-1, keepdims=True)
    return (x - mu) * jax.lax.rsqrt(var + EPS) * gamma + beta


def reference_forward(feat_1, feat_2, params):
    (w1, b1, g1, be1, w2, b2, g2, be2, wr, br) = params
    x = jnp.concatenate([feat_1, feat_2], axis=-1)
    residual = x @ wr + br
    out = x @ w1 + b1
    out = _layernorm_ref(out, g1, be1)
    out = jnp.maximum(out, 0.0)
    out = out @ w2 + b2
    out = _layernorm_ref(out, g2, be2)
    return jnp.maximum(out + residual, 0.0)


def init_params(key, feat_1_dim, feat_2_dim):
    """Deterministic synthetic parameters matching the torch module shapes.
    Linear weights stored [in_features, out_features] (transposed vs torch)."""
    input_dim = feat_1_dim + feat_2_dim
    output_dim = feat_1_dim
    ks = jax.random.split(key, 6)
    w1 = jax.random.normal(ks[0], (input_dim, output_dim), jnp.float32) * 0.05
    b1 = jax.random.normal(ks[1], (output_dim,), jnp.float32) * 0.05
    w2 = jax.random.normal(ks[2], (output_dim, output_dim), jnp.float32) * 0.05
    b2 = jax.random.normal(ks[3], (output_dim,), jnp.float32) * 0.05
    wr = jax.random.normal(ks[4], (input_dim, output_dim), jnp.float32) * 0.05
    br = jax.random.normal(ks[5], (output_dim,), jnp.float32) * 0.05
    g1 = jnp.ones((output_dim,), jnp.float32)
    be1 = jnp.zeros((output_dim,), jnp.float32)
    g2 = jnp.ones((output_dim,), jnp.float32)
    be2 = jnp.zeros((output_dim,), jnp.float32)
    return (w1, b1, g1, be1, w2, b2, g2, be2, wr, br)


if __name__ == "__main__":
    B = 16            # batch
    FEAT_1_DIM = 32   # transcriptomics feature dim (= output dim)
    FEAT_2_DIM = 16   # patch-context feature dim

    key = jax.random.PRNGKey(0)
    k_f1, k_f2, k_p = jax.random.split(key, 3)
    feat_1 = jax.random.normal(k_f1, (B, FEAT_1_DIM), jnp.float32)
    feat_2 = jax.random.normal(k_f2, (B, FEAT_2_DIM), jnp.float32)
    params = init_params(k_p, FEAT_1_DIM, FEAT_2_DIM)

    # tile_m=8 -> 2 parallel grid steps (keeps both v7x TensorCores busy at this
    # tiny demo batch).  For production batches use tile_m up to ~512 rows.
    out = combine_transcriptomics_patch_ctx(feat_1, feat_2, params, tile_m=8)
    out = jax.block_until_ready(out)

    ref = reference_forward(feat_1, feat_2, params)
    assert out.shape == (B, FEAT_1_DIM)
    assert jnp.allclose(out, ref, atol=1e-4, rtol=1e-4), "mismatch vs reference"

    print("KERNEL_OK")
</pallas_src>

<mosaic_0001>
module attributes {stable_mosaic.version = 11 : i64} {
  func.func @_combine_kernel(%arg0: i32, %arg1: memref<8x32xf32, #tpu.memory_space<vmem>>, %arg2: memref<8x16xf32, #tpu.memory_space<vmem>>, %arg3: memref<32x256xf32, #tpu.memory_space<vmem>>, %arg4: memref<16x256xf32, #tpu.memory_space<vmem>>, %arg5: memref<128x128xf32, #tpu.memory_space<vmem>>, %arg6: memref<8x256xf32, #tpu.memory_space<vmem>>, %arg7: memref<8x128xf32, #tpu.memory_space<vmem>>) attributes {dimension_semantics = [#tpu.dimension_semantics<parallel>], iteration_bounds = array<i64: 2>, scalar_prefetch = 0 : i64, scratch_operands = 0 : i64, tpu.core_type = #tpu.core_type<tc>, window_params = [{transform_indices = @transform_0, window_bounds = array<i64: 8, 32>}, {transform_indices = @transform_1, window_bounds = array<i64: 8, 16>}, {pipeline_mode = #tpu.pipeline_mode<synchronous>, transform_indices = @transform_2, window_bounds = array<i64: 32, 256>}, {pipeline_mode = #tpu.pipeline_mode<synchronous>, transform_indices = @transform_3, window_bounds = array<i64: 16, 256>}, {pipeline_mode = #tpu.pipeline_mode<synchronous>, transform_indices = @transform_4, window_bounds = array<i64: 128, 128>}, {pipeline_mode = #tpu.pipeline_mode<synchronous>, transform_indices = @transform_5, window_bounds = array<i64: 8, 256>}, {transform_indices = @transform_6, window_bounds = array<i64: 8, 128>}]} {
    %c0 = arith.constant 0 : index
    %c0_0 = arith.constant 0 : index
    %0 = vector.load %arg1[%c0, %c0_0] : memref<8x32xf32, #tpu.memory_space<vmem>>, vector<8x32xf32>
    %c0_1 = arith.constant 0 : index
    %c0_2 = arith.constant 0 : index
    %1 = vector.load %arg2[%c0_1, %c0_2] : memref<8x16xf32, #tpu.memory_space<vmem>>, vector<8x16xf32>
    %c0_3 = arith.constant 0 : index
    %c0_4 = arith.constant 0 : index
    %2 = vector.load %arg6[%c0_3, %c0_4] : memref<8x256xf32, #tpu.memory_space<vmem>>, vector<1x256xf32>
    %c1 = arith.constant 1 : index
    %c0_5 = arith.constant 0 : index
    %3 = vector.load %arg6[%c1, %c0_5] : memref<8x256xf32, #tpu.memory_space<vmem>>, vector<1x128xf32>
    %c2 = arith.constant 2 : index
    %c0_6 = arith.constant 0 : index
    %4 = vector.load %arg6[%c2, %c0_6] : memref<8x256xf32, #tpu.memory_space<vmem>>, vector<1x128xf32>
    %c3 = arith.constant 3 : index
    %c0_7 = arith.constant 0 : index
    %5 = vector.load %arg6[%c3, %c0_7] : memref<8x256xf32, #tpu.memory_space<vmem>>, vector<1x128xf32>
    %c4 = arith.constant 4 : index
    %c0_8 = arith.constant 0 : index
    %6 = vector.load %arg6[%c4, %c0_8] : memref<8x256xf32, #tpu.memory_space<vmem>>, vector<1x128xf32>
    %c5 = arith.constant 5 : index
    %c0_9 = arith.constant 0 : index
    %7 = vector.load %arg6[%c5, %c0_9] : memref<8x256xf32, #tpu.memory_space<vmem>>, vector<1x128xf32>
    %8 = tpu.iota {dimensions = array<i32: 1>} : vector<1x128xi32>
    %c32_i32 = arith.constant 32 : i32
    %9 = vector.broadcast %c32_i32 : i32 to vector<1x128xi32>
    %10 = arith.cmpi slt, %8, %9 : vector<1x128xi32>
    %11 = arith.extui %10 : vector<1x128xi1> to vector<1x128xi32>
    %12 = arith.sitofp %11 : vector<1x128xi32> to vector<1x128xf32>
    %c0_10 = arith.constant 0 : index
    %c0_11 = arith.constant 0 : index
    %13 = vector.load %arg3[%c0_10, %c0_11] : memref<32x256xf32, #tpu.memory_space<vmem>>, vector<32x256xf32>
    %cst = arith.constant dense<0.000000e+00> : vector<8x256xf32>
    %14 = tpu.matmul %0, %13, %cst {dimension_numbers = #tpu.dot_dimension_numbers<[1], [0], [0], [1], [0, 0, 1, 1], [], []>} : vector<8x32xf32>, vector<32x256xf32>, vector<8x256xf32> -> vector<8x256xf32>
    %c0_12 = arith.constant 0 : index
    %c0_13 = arith.constant 0 : index
    %15 = vector.load %arg4[%c0_12, %c0_13] : memref<16x256xf32, #tpu.memory_space<vmem>>, vector<16x256xf32>
    %cst_14 = arith.constant dense<0.000000e+00> : vector<8x256xf32>
    %16 = tpu.matmul %1, %15, %cst_14 {dimension_numbers = #tpu.dot_dimension_numbers<[1], [0], [0], [1], [0, 0, 1, 1], [], []>} : vector<8x16xf32>, vector<16x256xf32>, vector<8x256xf32> -> vector<8x256xf32>
    %17 = arith.addf %14, %16 : vector<8x256xf32>
    %18 = vector.broadcast %2 : vector<1x256xf32> to vector<8x256xf32>
    %19 = arith.addf %17, %18 : vector<8x256xf32>
    %20 = vector.extract_strided_slice %19 {offsets = [0, 0], sizes = [8, 128], strides = [1, 1]} : vector<8x256xf32> to vector<8x128xf32>
    %21 = vector.extract_strided_slice %19 {offsets = [0, 128], sizes = [8, 128], strides = [1, 1]} : vector<8x256xf32> to vector<8x128xf32>
    %cst_15 = arith.constant dense<0.000000e+00> : vector<8xf32>
    %22 = vector.multi_reduction <add>, %20, %cst_15 [1] : vector<8x128xf32> to vector<8xf32>
    %23 = vector.shape_cast %22 : vector<8xf32> to vector<8x1xf32>
    %cst_16 = arith.constant 3.125000e-02 : f32
    %24 = vector.broadcast %cst_16 : f32 to vector<8x1xf32>
    %25 = arith.mulf %23, %24 : vector<8x1xf32>
    %26 = vector.broadcast %25 : vector<8x1xf32> to vector<8x128xf32>
    %27 = arith.subf %20, %26 : vector<8x128xf32>
    %28 = vector.broadcast %12 : vector<1x128xf32> to vector<8x128xf32>
    %29 = arith.mulf %27, %28 : vector<8x128xf32>
    %30 = arith.mulf %29, %29 : vector<8x128xf32>
    %cst_17 = arith.constant dense<0.000000e+00> : vector<8xf32>
    %31 = vector.multi_reduction <add>, %30, %cst_17 [1] : vector<8x128xf32> to vector<8xf32>
    %32 = vector.shape_cast %31 : vector<8xf32> to vector<8x1xf32>
    %cst_18 = arith.constant 3.125000e-02 : f32
    %33 = vector.broadcast %cst_18 : f32 to vector<8x1xf32>
    %34 = arith.mulf %32, %33 : vector<8x1xf32>
    %cst_19 = arith.constant 9.99999974E-6 : f32
    %35 = vector.broadcast %cst_19 : f32 to vector<8x1xf32>
    %36 = arith.addf %34, %35 : vector<8x1xf32>
    %37 = math.rsqrt %36 : vector<8x1xf32>
    %38 = vector.broadcast %37 : vector<8x1xf32> to vector<8x128xf32>
    %39 = arith.mulf %29, %38 : vector<8x128xf32>
    %40 = vector.broadcast %3 : vector<1x128xf32> to vector<8x128xf32>
    %41 = arith.mulf %39, %40 : vector<8x128xf32>
    %42 = vector.broadcast %4 : vector<1x128xf32> to vector<8x128xf32>
    %43 = arith.addf %41, %42 : vector<8x128xf32>
    %cst_20 = arith.constant 0.000000e+00 : f32
    %44 = vector.broadcast %cst_20 : f32 to vector<8x128xf32>
    %45 = arith.maximumf %43, %44 : vector<8x128xf32>
    %c0_21 = arith.constant 0 : index
    %c0_22 = arith.constant 0 : index
    %46 = vector.load %arg5[%c0_21, %c0_22] : memref<128x128xf32, #tpu.memory_space<vmem>>, vector<128x128xf32>
    %cst_23 = arith.constant dense<0.000000e+00> : vector<8x128xf32>
    %47 = tpu.matmul %45, %46, %cst_23 {dimension_numbers = #tpu.dot_dimension_numbers<[1], [0], [0], [1], [0, 0, 1, 1], [], []>} : vector<8x128xf32>, vector<128x128xf32>, vector<8x128xf32> -> vector<8x128xf32>
    %48 = vector.broadcast %5 : vector<1x128xf32> to vector<8x128xf32>
    %49 = arith.addf %47, %48 : vector<8x128xf32>
    %cst_24 = arith.constant dense<0.000000e+00> : vector<8xf32>
    %50 = vector.multi_reduction <add>, %49, %cst_24 [1] : vector<8x128xf32> to vector<8xf32>
    %51 = vector.shape_cast %50 : vector<8xf32> to vector<8x1xf32>
    %cst_25 = arith.constant 3.125000e-02 : f32
    %52 = vector.broadcast %cst_25 : f32 to vector<8x1xf32>
    %53 = arith.mulf %51, %52 : vector<8x1xf32>
    %54 = vector.broadcast %53 : vector<8x1xf32> to vector<8x128xf32>
    %55 = arith.subf %49, %54 : vector<8x128xf32>
    %56 = vector.broadcast %12 : vector<1x128xf32> to vector<8x128xf32>
    %57 = arith.mulf %55, %56 : vector<8x128xf32>
    %58 = arith.mulf %57, %57 : vector<8x128xf32>
    %cst_26 = arith.constant dense<0.000000e+00> : vector<8xf32>
    %59 = vector.multi_reduction <add>, %58, %cst_26 [1] : vector<8x128xf32> to vector<8xf32>
    %60 = vector.shape_cast %59 : vector<8xf32> to vector<8x1xf32>
    %cst_27 = arith.constant 3.125000e-02 : f32
    %61 = vector.broadcast %cst_27 : f32 to vector<8x1xf32>
    %62 = arith.mulf %60, %61 : vector<8x1xf32>
    %cst_28 = arith.constant 9.99999974E-6 : f32
    %63 = vector.broadcast %cst_28 : f32 to vector<8x1xf32>
    %64 = arith.addf %62, %63 : vector<8x1xf32>
    %65 = math.rsqrt %64 : vector<8x1xf32>
    %66 = vector.broadcast %65 : vector<8x1xf32> to vector<8x128xf32>
    %67 = arith.mulf %57, %66 : vector<8x128xf32>
    %68 = vector.broadcast %6 : vector<1x128xf32> to vector<8x128xf32>
    %69 = arith.mulf %67, %68 : vector<8x128xf32>
    %70 = vector.broadcast %7 : vector<1x128xf32> to vector<8x128xf32>
    %71 = arith.addf %69, %70 : vector<8x128xf32>
    %72 = arith.addf %71, %21 : vector<8x128xf32>
    %cst_29 = arith.constant 0.000000e+00 : f32
    %73 = vector.broadcast %cst_29 : f32 to vector<8x128xf32>
    %74 = arith.maximumf %72, %73 : vector<8x128xf32>
    %c0_30 = arith.constant 0 : index
    %c0_31 = arith.constant 0 : index
    %75 = vector.load %arg7[%c0_30, %c0_31] : memref<8x128xf32, #tpu.memory_space<vmem>>, vector<8x128xf32>
    tpu.vector_store %arg7[%c0_30, %c0_31], %74 {strides = array<i32>} : memref<8x128xf32, #tpu.memory_space<vmem>>, vector<8x128xf32>,
    return
  }
  func.func @transform_0(%arg0: i32) -> (i32, i32) {
    %c0_i32 = arith.constant 0 : i32
    %c0_i32_0 = arith.constant 0 : i32
    return %arg0, %c0_i32 : i32, i32
  }
  func.func @transform_1(%arg0: i32) -> (i32, i32) {
    %c0_i32 = arith.constant 0 : i32
    %c0_i32_0 = arith.constant 0 : i32
    return %arg0, %c0_i32 : i32, i32
  }
  func.func @transform_2(%arg0: i32) -> (i32, i32) {
    %c0_i32 = arith.constant 0 : i32
    %c0_i32_0 = arith.constant 0 : i32
    %c0_i32_1 = arith.constant 0 : i32
    return %c0_i32, %c0_i32_0 : i32, i32
  }
  func.func @transform_3(%arg0: i32) -> (i32, i32) {
    %c0_i32 = arith.constant 0 : i32
    %c0_i32_0 = arith.constant 0 : i32
    %c0_i32_1 = arith.constant 0 : i32
    return %c0_i32, %c0_i32_0 : i32, i32
  }
  func.func @transform_4(%arg0: i32) -> (i32, i32) {
    %c0_i32 = arith.constant 0 : i32
    %c0_i32_0 = arith.constant 0 : i32
    %c0_i32_1 = arith.constant 0 : i32
    return %c0_i32, %c0_i32_0 : i32, i32
  }
  func.func @transform_5(%arg0: i32) -> (i32, i32) {
    %c0_i32 = arith.constant 0 : i32
    %c0_i32_0 = arith.constant 0 : i32
    %c0_i32_1 = arith.constant 0 : i32
    return %c0_i32, %c0_i32_0 : i32, i32
  }
  func.func @transform_6(%arg0: i32) -> (i32, i32) {
    %c0_i32 = arith.constant 0 : i32
    %c0_i32_0 = arith.constant 0 : i32
    return %arg0, %c0_i32 : i32, i32
  }
}

</mosaic_0001>

<llo_original>
// kernel: tpu_custom_call.1
$region0: #{tpu_custom_call.1}
  #allocation0 [shape = 'u32[]', space=smem, size = 0x4, offset = 0x4, fixed_abs, tag = 'smem constant byte address 0x4 - core index']
  #allocation1 [shape = 'u32[144,128]{1,0:T(1,128)}', space=vmem, size = 0x12000, scoped, tag = 'internal scratch']
  %s0 = inlined_call_operand.hbm [shape: f32[16,32], index: 0, kind: input, shape index: {}]
  %s1 = inlined_call_operand.hbm [shape: f32[16,16], index: 1, kind: input, shape index: {}]
  %s2 = inlined_call_operand.hbm [shape: f32[32,256], index: 2, kind: input, shape index: {}]
  %s3 = inlined_call_operand.hbm [shape: f32[16,256], index: 3, kind: input, shape index: {}]
  %s4 = inlined_call_operand.hbm [shape: f32[128,128], index: 4, kind: input, shape index: {}]
  %s5 = inlined_call_operand.hbm [shape: f32[8,256], index: 5, kind: input, shape index: {}]
  %s6 = inlined_call_operand.hbm [shape: f32[16,128], index: 6, kind: output, shape index: {}]
  %s7 = sld [smem:[#allocation0]]
  $region81: #{tpu_custom_call.1} parent=0
    _
  %s9 = ssub.s32 1, %s7
  %s10 = scalar_select 0, %s9, %s7
  $region1: #{tpu_custom_call.1} parent=0
    #allocation2 [shape = 'u8[8192]{0}', space=vmem, size = 0x2000, scoped, tag = 'input window, operand 0']
    #allocation3 [shape = 's32[2]{0}', space=sflag, size = 0x8, scoped, tag = 'scoped memory for tpu_custom_call.1']
    #allocation4 [shape = 's32[2]{0}', space=sflag, size = 0x8, scoped, tag = 'scoped memory for tpu_custom_call.1']
    #allocation5 [shape = 'u8[8192]{0}', space=vmem, size = 0x2000, scoped, tag = 'input window, operand 1']
    #allocation6 [shape = 's32[2]{0}', space=sflag, size = 0x8, scoped, tag = 'scoped memory for tpu_custom_call.1']
    #allocation7 [shape = 'u8[32768]{0}', space=vmem, size = 0x8000, scoped, tag = 'input window, operand 2, single buffered']
    #allocation8 [shape = 'u8[16384]{0}', space=vmem, size = 0x4000, scoped, tag = 'input window, operand 3, single buffered']
    #allocation9 [shape = 's32[1]{0}', space=sflag, size = 0x4, scoped, tag = 'scoped memory for tpu_custom_call.1']
    #allocation10 [shape = 'u8[65536]{0}', space=vmem, size = 0x10000, scoped, tag = 'input window, operand 4, single buffered']
    #allocation11 [shape = 'u8[8192]{0}', space=vmem, size = 0x2000, scoped, tag = 'input window, operand 5, single buffered']
    #allocation12 [shape = 's32[1]{0}', space=sflag, size = 0x4, scoped, tag = 'scoped memory for tpu_custom_call.1']
    #allocation13 [shape = 'u8[8192]{0}', space=vmem, size = 0x2000, scoped, tag = 'output window, operand 0']
    %11 = vsyncpa [#allocation3], 0
    %s12 = scalar_lea.sflag [#allocation3], 1
    %13 = vsyncpa %s12, 0
    %14 = vsyncpa [#allocation6], 0
    %s15 = scalar_lea.sflag [#allocation6], 1
    %16 = vsyncpa %s15, 0
    %17 = vsyncpa [#allocation9], 0
    %18 = vsyncpa [#allocation12], 0
    %19 = vsyncpa [#allocation4], 0
    %s20 = scalar_lea.sflag [#allocation4], 1
    %21 = vsyncpa %s20, 0
    loop: start=0, step=1, limit=4
    $region2: #{tpu_custom_call.1} parent=1 // loop_pre_header
      _
    $region3: #{tpu_custom_call.1} parent=1 // loop_header
      %s23 = sphi 0, %s27
      %p24 = scmp.ge.s32.totalorder %s23, 4
      %s33 = sphi 0, %s35
      %s36 = sphi 0, %s33
      %s37 = sphi 0, %s36
      %s53 = sphi 0, %s37
      %s59 = sphi 0, %s61
      %s62 = sphi 0, %s59
      %s63 = sphi 0, %s62
      %s79 = sphi 0, %s63
      %s83 = sphi 0, %s83
      %s85 = sphi 0, %s83
      %s86 = sphi 0, %s85
      %s100 = sphi 0, %s86
      %s104 = sphi 0, %s104
      %s106 = sphi 0, %s104
      %s107 = sphi 0, %s106
      %s121 = sphi 0, %s107
      %s125 = sphi 0, %s125
      %s127 = sphi 0, %s125
      %s128 = sphi 0, %s127
      %s142 = sphi 0, %s128
      %s146 = sphi 0, %s146
      %s148 = sphi 0, %s146
      %s149 = sphi 0, %s148
      %s163 = sphi 0, %s149
      %s169 = sphi 0, %s171
      %s172 = sphi 0, %s169
      %s173 = sphi 0, %s172
      %s189 = sphi 0, %s173
    $region4: #{tpu_custom_call.1} parent=1 // loop_header_branch
      %26 = sbr.rel (%p24) target = $region8
    $region5: #{tpu_custom_call.1} parent=1 // loop_body
      %s28 = ssub.s32 %s23, 1
      %s29 = ssub.s32 %s23, 2
      %s30 = sadd.s32 %s23, 1
      %s31 = ssub.s32 %s23, %s30
      %p32 = scmp.eq.s32.totalorder %s31, 0
      %s34 = sadd.s32 %s33, 1
      %s35 = scalar_select %p32, %s33, %s34
      %p38 = pneg %p32
      %p39 = scmp.eq.s32.totalorder %s23, 1
      %p40 = por %p38, %p39
      %p41 = scmp.ne.s32.totalorder %s33, %s36
      %p42 = scmp.eq.s32.totalorder %s23, 0
      %p43 = por %p41, %p42
      %p44 = scmp.ne.s32.totalorder %s33, %s36
      %p45 = scmp.eq.s32.totalorder %s28, 1
      %p46 = por %p44, %p45
      %p47 = scmp.ne.s32.totalorder %s36, %s37
      %p48 = scmp.eq.s32.totalorder %s28, 0
      %p49 = por %p47, %p48
      %p50 = scmp.ne.s32.totalorder %s36, %s37
      %p51 = scmp.eq.s32.totalorder %s29, 1
      %p52 = por %p50, %p51
      %p54 = scmp.ne.s32.totalorder %s37, %s53
      %p55 = scmp.eq.s32.totalorder %s29, 0
      %p56 = por %p54, %p55
      %s57 = ssub.s32 %s23, %s30
      %p58 = scmp.eq.s32.totalorder %s57, 0
      %s60 = sadd.s32 %s59, 1
      %s61 = scalar_select %p58, %s59, %s60
      %p64 = pneg %p58
      %p65 = scmp.eq.s32.totalorder %s23, 1
      %p66 = por %p64, %p65
      %p67 = scmp.ne.s32.totalorder %s59, %s62
      %p68 = scmp.eq.s32.totalorder %s23, 0
      %p69 = por %p67, %p68
      %p70 = scmp.ne.s32.totalorder %s59, %s62
      %p71 = scmp.eq.s32.totalorder %s28, 1
      %p72 = por %p70, %p71
      %p73 = scmp.ne.s32.totalorder %s62, %s63
      %p74 = scmp.eq.s32.totalorder %s28, 0
      %p75 = por %p73, %p74
      %p76 = scmp.ne.s32.totalorder %s62, %s63
      %p77 = scmp.eq.s32.totalorder %s29, 1
      %p78 = por %p76, %p77
      %p80 = scmp.ne.s32.totalorder %s63, %s79
      %p81 = scmp.eq.s32.totalorder %s29, 0
      %p82 = por %p80, %p81
      %s84 = sadd.s32 %s83, 1
      %p87 = scmp.eq.s32.totalorder %s23, 1
      %p88 = scmp.ne.s32.totalorder %s83, %s85
      %p89 = scmp.eq.s32.totalorder %s23, 0
      %p90 = por %p88, %p89
      %p91 = scmp.ne.s32.totalorder %s83, %s85
      %p92 = scmp.eq.s32.totalorder %s28, 1
      %p93 = por %p91, %p92
      %p94 = scmp.ne.s32.totalorder %s85, %s86
      %p95 = scmp.eq.s32.totalorder %s28, 0
      %p96 = por %p94, %p95
      %p97 = scmp.ne.s32.totalorder %s85, %s86
      %p98 = scmp.eq.s32.totalorder %s29, 1
      %p99 = por %p97, %p98
      %p101 = scmp.ne.s32.totalorder %s86, %s100
      %p102 = scmp.eq.s32.totalorder %s29, 0
      %p103 = por %p101, %p102
      %s105 = sadd.s32 %s104, 1
      %p108 = scmp.eq.s32.totalorder %s23, 1
      %p109 = scmp.ne.s32.totalorder %s104, %s106
      %p110 = scmp.eq.s32.totalorder %s23, 0
      %p111 = por %p109, %p110
      %p112 = scmp.ne.s32.totalorder %s104, %s106
      %p113 = scmp.eq.s32.totalorder %s28, 1
      %p114 = por %p112, %p113
      %p115 = scmp.ne.s32.totalorder %s106, %s107
      %p116 = scmp.eq.s32.totalorder %s28, 0
      %p117 = por %p115, %p116
      %p118 = scmp.ne.s32.totalorder %s106, %s107
      %p119 = scmp.eq.s32.totalorder %s29, 1
      %p120 = por %p118, %p119
      %p122 = scmp.ne.s32.totalorder %s107, %s121
      %p123 = scmp.eq.s32.totalorder %s29, 0
      %p124 = por %p122, %p123
      %s126 = sadd.s32 %s125, 1
      %p129 = scmp.eq.s32.totalorder %s23, 1
      %p130 = scmp.ne.s32.totalorder %s125, %s127
      %p131 = scmp.eq.s32.totalorder %s23, 0
      %p132 = por %p130, %p131
      %p133 = scmp.ne.s32.totalorder %s125, %s127
      %p134 = scmp.eq.s32.totalorder %s28, 1
      %p135 = por %p133, %p134
      %p136 = scmp.ne.s32.totalorder %s127, %s128
      %p137 = scmp.eq.s32.totalorder %s28, 0
      %p138 = por %p136, %p137
      %p139 = scmp.ne.s32.totalorder %s127, %s128
      %p140 = scmp.eq.s32.totalorder %s29, 1
      %p141 = por %p139, %p140
      %p143 = scmp.ne.s32.totalorder %s128, %s142
      %p144 = scmp.eq.s32.totalorder %s29, 0
      %p145 = por %p143, %p144
      %s147 = sadd.s32 %s146, 1
      %p150 = scmp.eq.s32.totalorder %s23, 1
      %p151 = scmp.ne.s32.totalorder %s146, %s148
      %p152 = scmp.eq.s32.totalorder %s23, 0
      %p153 = por %p151, %p152
      %p154 = scmp.ne.s32.totalorder %s146, %s148
      %p155 = scmp.eq.s32.totalorder %s28, 1
      %p156 = por %p154, %p155
      %p157 = scmp.ne.s32.totalorder %s148, %s149
      %p158 = scmp.eq.s32.totalorder %s28, 0
      %p159 = por %p157, %p158
      %p160 = scmp.ne.s32.totalorder %s148, %s149
      %p161 = scmp.eq.s32.totalorder %s29, 1
      %p162 = por %p160, %p161
      %p164 = scmp.ne.s32.totalorder %s149, %s163
      %p165 = scmp.eq.s32.totalorder %s29, 0
      %p166 = por %p164, %p165
      %s167 = ssub.s32 %s23, %s30
      %p168 = scmp.eq.s32.totalorder %s167, 0
      %s170 = sadd.s32 %s169, 1
      %s171 = scalar_select %p168, %s169, %s170
      %p174 = pneg %p168
      %p175 = scmp.eq.s32.totalorder %s23, 1
      %p176 = por %p174, %p175
      %p177 = scmp.ne.s32.totalorder %s169, %s172
      %p178 = scmp.eq.s32.totalorder %s23, 0
      %p179 = por %p177, %p178
      %p180 = scmp.ne.s32.totalorder %s169, %s172
      %p181 = scmp.eq.s32.totalorder %s28, 1
      %p182 = por %p180, %p181
      %p183 = scmp.ne.s32.totalorder %s172, %s173
      %p184 = scmp.eq.s32.totalorder %s28, 0
      %p185 = por %p183, %p184
      %p186 = scmp.ne.s32.totalorder %s172, %s173
      %p187 = scmp.eq.s32.totalorder %s29, 1
      %p188 = por %p186, %p187
      %p190 = scmp.ne.s32.totalorder %s173, %s189
      %p191 = scmp.eq.s32.totalorder %s29, 0
      %p192 = por %p190, %p191
      %p193 = scmp.le.s32.totalorder 1, %s23
      %p194 = scmp.lt.s32.totalorder %s23, 3
      %p195 = pnand %p193, %p194
      %p196 = pneg %p195
      // Predicated region
      $region9: #{tpu_custom_call.1} parent=5 // pred_check
        _
      $region10: #{tpu_custom_call.1} parent=5 // pred_check_branch
        %198 = sbr.rel (%p195) target = $region12
      $region11: #{tpu_custom_call.1} parent=5 // pred_region
        %s199 = ssub.s32 %s23, 1
        // Predicated region
        $region13: #{tpu_custom_call.1} parent=11 // pred_check
          %p200 = pneg %p96
        $region14: #{tpu_custom_call.1} parent=11 // pred_check_branch
          %202 = sbr.rel (%p200) target = $region16
        $region15: #{tpu_custom_call.1} parent=11 // pred_region
          %s204 = ssub.s32 1024, 1024
          %205 = vsyncadd [#allocation6], %s204
          %s206 = sshll.u32 [#allocation7], 4
          %s207 = int_to_ptr.vmem [resolvable:$true] %s206
          %212 = dma.hbm_to_vmem [thread:$0]  %s2, 1024, %s207, [#allocation6], 256, 256, 16
        $region16: #{tpu_custom_call.1} parent=11 // pred_fallthru
          _
        // Predicated region
        $region17: #{tpu_custom_call.1} parent=11 // pred_check
          %p213 = pneg %p117
        $region18: #{tpu_custom_call.1} parent=11 // pred_check_branch
          %215 = sbr.rel (%p213) target = $region20
        $region19: #{tpu_custom_call.1} parent=11 // pred_region
          %s217 = ssub.s32 512, 512
          %218 = vsyncadd [#allocation9], %s217
          %s219 = sshll.u32 [#allocation8], 4
          %s220 = int_to_ptr.vmem [resolvable:$true] %s219
          %225 = dma.hbm_to_vmem [thread:$0]  %s3, 512, %s220, [#allocation9], 256, 256, 16
        $region20: #{tpu_custom_call.1} parent=11 // pred_fallthru
          _
        // Predicated region
        $region21: #{tpu_custom_call.1} parent=11 // pred_check
          %p226 = pneg %p138
        $region22: #{tpu_custom_call.1} parent=11 // pred_check_branch
          %228 = sbr.rel (%p226) target = $region24
        $region23: #{tpu_custom_call.1} parent=11 // pred_region
          %s230 = ssub.s32 2048, 2048
          %231 = vsyncadd [#allocation9], %s230
          %s232 = sshll.u32 [#allocation10], 4
          %s233 = int_to_ptr.vmem [resolvable:$true] %s232
          %238 = dma.hbm_to_vmem [thread:$0]  %s4, 2048, %s233, [#allocation9], 128, 128, 8
        $region24: #{tpu_custom_call.1} parent=11 // pred_fallthru
          _
        // Predicated region
        $region25: #{tpu_custom_call.1} parent=11 // pred_check
          %p239 = pneg %p159
        $region26: #{tpu_custom_call.1} parent=11 // pred_check_branch
          %241 = sbr.rel (%p239) target = $region28
        $region27: #{tpu_custom_call.1} parent=11 // pred_region
          %s243 = ssub.s32 256, 256
          %244 = vsyncadd [#allocation12], %s243
          %s246 = sshll.u32 [#allocation11], 4
          %s247 = int_to_ptr.vmem [resolvable:$true] %s246
          %249 = dma.hbm_to_vmem [thread:$0]  %s5, 256, %s247, [#allocation12]
        $region28: #{tpu_custom_call.1} parent=11 // pred_fallthru
          _
      $region12: #{tpu_custom_call.1} parent=5 // pred_fallthru
        _
      %p250 = scmp.lt.s32.totalorder %s23, 2
      // Predicated region
      $region29: #{tpu_custom_call.1} parent=5 // pred_check
        %p251 = pneg %p250
      $region30: #{tpu_custom_call.1} parent=5 // pred_check_branch
        %253 = sbr.rel (%p251) target = $region32
      $region31: #{tpu_custom_call.1} parent=5 // pred_region
        // Predicated region
        $region33: #{tpu_custom_call.1} parent=31 // pred_check
          %p254 = pneg %p43
        $region34: #{tpu_custom_call.1} parent=31 // pred_check_branch
          %256 = sbr.rel (%p254) target = $region36
        $region35: #{tpu_custom_call.1} parent=31 // pred_region
          %s257 = sand.u32 %s33, 1
          %s258 = scalar_lea.sflag [#allocation3], %s257
          %s259 = sand.u32 %s33, 1
          %s260 = smul.addr %s259, 8
          %s261 = scalar_lea.vmem [#allocation2], %s260
          %s263 = ssub.s32 128, 128
          %264 = vsyncadd %s258, %s263
          %s265 = smul.addr %s23, 128
          %s266 = scalar_lea.hbm %s0, %s265
          %s268 = sshll.u32 %s261, 4
          %s269 = int_to_ptr.vmem [resolvable:$true] %s268
          %271 = dma.hbm_to_vmem [thread:$0]  %s266, 128, %s269, %s258
        $region36: #{tpu_custom_call.1} parent=31 // pred_fallthru
          _
        // Predicated region
        $region37: #{tpu_custom_call.1} parent=31 // pred_check
          %p272 = pneg %p69
        $region38: #{tpu_custom_call.1} parent=31 // pred_check_branch
          %274 = sbr.rel (%p272) target = $region40
        $region39: #{tpu_custom_call.1} parent=31 // pred_region
          %s275 = sand.u32 %s23, 1
          %s276 = scalar_lea.sflag [#allocation6], %s275
          %s277 = sand.u32 %s59, 1
          %s278 = smul.addr %s277, 8
          %s279 = scalar_lea.vmem [#allocation5], %s278
          %s281 = ssub.s32 128, 128
          %282 = vsyncadd %s276, %s281
          %s283 = smul.addr %s23, 128
          %s284 = scalar_lea.hbm %s1, %s283
          %s286 = sshll.u32 %s279, 4
          %s287 = int_to_ptr.vmem [resolvable:$true] %s286
          %289 = dma.hbm_to_vmem [thread:$0]  %s284, 128, %s287, %s276
        $region40: #{tpu_custom_call.1} parent=31 // pred_fallthru
          _
      $region32: #{tpu_custom_call.1} parent=5 // pred_fallthru
        _
      %p290 = scmp.le.s32.totalorder 1, %s23
      %p291 = scmp.lt.s32.totalorder %s23, 3
      %p292 = pnand %p290, %p291
      %p293 = pneg %p292
      // Predicated region
      $region41: #{tpu_custom_call.1} parent=5 // pred_check
        _
      $region42: #{tpu_custom_call.1} parent=5 // pred_check_branch
        %295 = sbr.rel (%p292) target = $region44
      $region43: #{tpu_custom_call.1} parent=5 // pred_region
        %s296 = ssub.s32 %s23, 1
        %s297 = sand.u32 %s36, 1
        %s298 = scalar_lea.sflag [#allocation3], %s297
        %s299 = sand.u32 %s36, 1
        %s300 = smul.addr %s299, 8
        %s301 = scalar_lea.vmem [#allocation2], %s300
        // Predicated region
        $region45: #{tpu_custom_call.1} parent=43 // pred_check
          %p302 = pneg %p49
        $region46: #{tpu_custom_call.1} parent=43 // pred_check_branch
          %304 = sbr.rel (%p302) target = $region48
        $region47: #{tpu_custom_call.1} parent=43 // pred_region
          %305 = dma.done %s298, 128
        $region48: #{tpu_custom_call.1} parent=43 // pred_fallthru
          _
        %s306 = sand.u32 %s28, 1
        %s307 = scalar_lea.sflag [#allocation6], %s306
        %s308 = sand.u32 %s62, 1
        %s309 = smul.addr %s308, 8
        %s310 = scalar_lea.vmem [#allocation5], %s309
        // Predicated region
        $region49: #{tpu_custom_call.1} parent=43 // pred_check
          %p311 = pneg %p75
        $region50: #{tpu_custom_call.1} parent=43 // pred_check_branch
          %313 = sbr.rel (%p311) target = $region52
        $region51: #{tpu_custom_call.1} parent=43 // pred_region
          %314 = dma.done %s307, 128
        $region52: #{tpu_custom_call.1} parent=43 // pred_fallthru
          _
        // Predicated region
        $region53: #{tpu_custom_call.1} parent=43 // pred_check
          %p315 = pneg %p96
        $region54: #{tpu_custom_call.1} parent=43 // pred_check_branch
          %317 = sbr.rel (%p315) target = $region56
        $region55: #{tpu_custom_call.1} parent=43 // pred_region
          %318 = dma.done [#allocation6], 1024
        $region56: #{tpu_custom_call.1} parent=43 // pred_fallthru
          _
        // Predicated region
        $region57: #{tpu_custom_call.1} parent=43 // pred_check
          %p319 = pneg %p117
        $region58: #{tpu_custom_call.1} parent=43 // pred_check_branch
          %321 = sbr.rel (%p319) target = $region60
        $region59: #{tpu_custom_call.1} parent=43 // pred_region
          %322 = dma.done [#allocation9], 512
        $region60: #{tpu_custom_call.1} parent=43 // pred_fallthru
          _
        // Predicated region
        $region61: #{tpu_custom_call.1} parent=43 // pred_check
          %p323 = pneg %p138
        $region62: #{tpu_custom_call.1} parent=43 // pred_check_branch
          %325 = sbr.rel (%p323) target = $region64
        $region63: #{tpu_custom_call.1} parent=43 // pred_region
          %326 = dma.done [#allocation9], 2048
        $region64: #{tpu_custom_call.1} parent=43 // pred_fallthru
          _
        // Predicated region
        $region65: #{tpu_custom_call.1} parent=43 // pred_check
          %p327 = pneg %p159
        $region66: #{tpu_custom_call.1} parent=43 // pred_check_branch
          %329 = sbr.rel (%p327) target = $region68
        $region67: #{tpu_custom_call.1} parent=43 // pred_region
          %330 = dma.done [#allocation12], 256
        $region68: #{tpu_custom_call.1} parent=43 // pred_fallthru
          _
        %s331 = sand.u32 %s36, 1
        %s332 = scalar_lea.sflag [#allocation3], %s331
        %s333 = sand.u32 %s36, 1
        %s334 = smul.addr %s333, 8
        %s335 = scalar_lea.vmem [#allocation2], %s334
        %p336 = pneg %p49
        %p337 = pneg %p46
        %s338 = sand.u32 %s28, 1
        %s339 = scalar_lea.sflag [#allocation6], %s338
        %s340 = sand.u32 %s62, 1
        %s341 = smul.addr %s340, 8
        %s342 = scalar_lea.vmem [#allocation5], %s341
        %p343 = pneg %p75
        %p344 = pneg %p72
        %p345 = pneg %p96
        %p346 = pneg %p93
        %p347 = pneg %p117
        %p348 = pneg %p114
        %p349 = pneg %p138
        %p350 = pneg %p135
        %p351 = pneg %p159
        %p352 = pneg %p156
        %p353 = pneg %p185
        %p354 = pneg %p182
        %s355 = sand.u32 %s172, 1
        %s356 = scalar_lea.sflag [#allocation4], %s355
        %s357 = sand.u32 %s172, 1
        %s358 = smul.addr %s357, 8
        %s359 = scalar_lea.vmem [#allocation13], %s358
        %v360 = vld [vmem:[%s301] sm:$0xff]
        %v361 = vld [vmem:[%s310] sm:$0xff]
        %v362 = vld [vmem:[#allocation11] ss:$8 sm:$0x3]
        %v363 = vld [vmem:[#allocation11 + $0x1] ss:$0 sm:$0xff]
        %v364 = vld [vmem:[#allocation11 + $0x2] ss:$0 sm:$0xff]
        %v365 = vld [vmem:[#allocation11 + $0x3] ss:$0 sm:$0xff]
        %v366 = vld [vmem:[#allocation11 + $0x4] ss:$0 sm:$0xff]
        %v367 = vld [vmem:[#allocation11 + $0x5] ss:$0 sm:$0xff]
        %v368 = vlaneseq
        %v369 = vand.u32 %v368, 127
        %vm370 = vcmp.lt.s32.totalorder %v369, 32
        %v371 = vsel %vm370, 1, 0
        %v372 = vcvt.s32.f32 %v371
        %v373 = vld [vmem:[#allocation7] sm:$0xff]
        %v374 = vld [vmem:[#allocation7 + $0x8] sm:$0xff]
        %v375 = vld [vmem:[#allocation7 + $0x10] sm:$0xff]
        %v376 = vld [vmem:[#allocation7 + $0x18] sm:$0xff]
        %v377 = vld [vmem:[#allocation7 + $0x20] sm:$0xff]
        %v378 = vld [vmem:[#allocation7 + $0x28] sm:$0xff]
        %v379 = vld [vmem:[#allocation7 + $0x30] sm:$0xff]
        %v380 = vld [vmem:[#allocation7 + $0x38] sm:$0xff]
        %v381 = vld [vmem:[#allocation8] sm:$0xff]
        %v382 = vld [vmem:[#allocation8 + $0x8] sm:$0xff]
        %v383 = vld [vmem:[#allocation8 + $0x10] sm:$0xff]
        %v384 = vld [vmem:[#allocation8 + $0x18] sm:$0xff]
        %vm385 = vcmask 130048
        %v387 = vsel %vm385, %v361, 0
        %389 = vmatprep.subr.mxu0 %v382
        %390 = vmatpush1.msra.mxu0 %v381
        %391 = vmatprep.subr.mxu0 %v384
        %392 = vmatpush1.msra.mxu0 %v383
        %393 = vmatprep.subr.mxu0 0.0
        %394 = vmatpush1.msra.mxu0 0.0
        %395 = vmatprep.subr.mxu0 0.0
        %396 = vmatpush1.msra.mxu0 0.0
        %397 = vmatprep.subr.mxu0 0.0
        %398 = vmatpush1.msra.mxu0 0.0
        %399 = vmatprep.subr.mxu0 0.0
        %400 = vmatpush1.msra.mxu0 0.0
        %401 = vmatprep.subr.mxu0 0.0
        %402 = vmatpush1.msra.mxu0 0.0
        %403 = vmatprep.subr.mxu0 0.0
        %404 = vmatpush1.msra.mxu0 0.0
        %405 = vmatprep.subr.mxu0 0.0
        %406 = vmatpush1.msra.mxu0 0.0
        %407 = vmatprep.subr.mxu0 0.0
        %408 = vmatpush1.msra.mxu0 0.0
        %409 = vmatprep.subr.mxu0 0.0
        %410 = vmatpush1.msra.mxu0 0.0
        %411 = vmatprep.subr.mxu0 0.0
        %412 = vmatpush1.msra.mxu0 0.0
        %413 = vmatprep.subr.mxu0 0.0
        %414 = vmatpush1.msra.mxu0 0.0
        %415 = vmatprep.subr.mxu0 0.0
        %416 = vmatpush1.msra.mxu0 0.0
        %417 = vmatprep.subr.mxu0 0.0
        %418 = vmatpush1.msra.mxu0 0.0
        %419 = vmatprep.subr.mxu0 0.0
        %420 = vmatpush1.msra.mxu0 0.0
        %421 = vmatprep.subr.mxu0 0.0
        %422 = vmatpush1.msra.mxu0 0.0
        %423 = vmatprep.subr.mxu0 0.0
        %424 = vmatpush1.msra.mxu0 0.0
        %425 = vmatprep.subr.mxu0 0.0
        %426 = vmatpush1.msra.mxu0 0.0
        %427 = vmatprep.subr.mxu0 0.0
        %428 = vmatpush1.msra.mxu0 0.0
        %429 = vmatprep.subr.mxu0 0.0
        %430 = vmatpush1.msra.mxu0 0.0
        %431 = vmatprep.subr.mxu0 0.0
        %432 = vmatpush1.msra.mxu0 0.0
        %433 = vmatprep.subr.mxu0 0.0
        %434 = vmatpush1.msra.mxu0 0.0
        %435 = vmatprep.subr.mxu0 0.0
        %436 = vmatpush1.msra.mxu0 0.0
        %437 = vmatprep.subr.mxu0 0.0
        %438 = vmatpush1.msra.mxu0 0.0
        %439 = vmatprep.subr.mxu0 0.0
        %440 = vmatpush1.msra.mxu0 0.0
        %441 = vmatprep.subr.mxu0 0.0
        %442 = vmatpush1.msra.mxu0 0.0
        %443 = vmatprep.subr.mxu0 0.0
        %444 = vmatpush1.msra.mxu0 0.0
        %445 = vmatprep.subr.mxu0 0.0
        %446 = vmatpush1.msra.mxu0 0.0
        %447 = vmatprep.subr.mxu0 0.0
        %448 = vmatpush1.msra.mxu0 0.0
        %449 = vmatprep.subr.mxu0 0.0
        %450 = vmatpush1.msra.mxu0 0.0
        %451 = vmatprep.subr.mxu0 0.0
        %452 = vmatpush1.msra.mxu0 0.0
        %453 = vmatprep.mubr.f32.mxu0 0.0
        %454 = vmatmul.mubr.f32.gmra.mrb[0].mxu0 %v387
        %v455 = vpop.f32.mrb[0].mxu0
        %v456 = vadd.f32 0.0, %v455
        %v457 = vpop.f32.mrb[0].mxu0
        %v458 = vadd.f32 0.0, %v457
        %459 = vdwg.mxu0
        %vm460 = vcmask 261120
        %v462 = vsel %vm460, %v360, 0
        %464 = vmatprep.subr.mxu0 %v374
        %465 = vmatpush1.msra.mxu0 %v373
        %466 = vmatprep.subr.mxu0 %v376
        %467 = vmatpush1.msra.mxu0 %v375
        %468 = vmatprep.subr.mxu0 %v378
        %469 = vmatpush1.msra.mxu0 %v377
        %470 = vmatprep.subr.mxu0 %v380
        %471 = vmatpush1.msra.mxu0 %v379
        %472 = vmatprep.subr.mxu0 0.0
        %473 = vmatpush1.msra.mxu0 0.0
        %474 = vmatprep.subr.mxu0 0.0
        %475 = vmatpush1.msra.mxu0 0.0
        %476 = vmatprep.subr.mxu0 0.0
        %477 = vmatpush1.msra.mxu0 0.0
        %478 = vmatprep.subr.mxu0 0.0
        %479 = vmatpush1.msra.mxu0 0.0
        %480 = vmatprep.subr.mxu0 0.0
        %481 = vmatpush1.msra.mxu0 0.0
        %482 = vmatprep.subr.mxu0 0.0
        %483 = vmatpush1.msra.mxu0 0.0
        %484 = vmatprep.subr.mxu0 0.0
        %485 = vmatpush1.msra.mxu0 0.0
        %486 = vmatprep.subr.mxu0 0.0
        %487 = vmatpush1.msra.mxu0 0.0
        %488 = vmatprep.subr.mxu0 0.0
        %489 = vmatpush1.msra.mxu0 0.0
        %490 = vmatprep.subr.mxu0 0.0
        %491 = vmatpush1.msra.mxu0 0.0
        %492 = vmatprep.subr.mxu0 0.0
        %493 = vmatpush1.msra.mxu0 0.0
        %494 = vmatprep.subr.mxu0 0.0
        %495 = vmatpush1.msra.mxu0 0.0
        %496 = vmatprep.subr.mxu0 0.0
        %497 = vmatpush1.msra.mxu0 0.0
        %498 = vmatprep.subr.mxu0 0.0
        %499 = vmatpush1.msra.mxu0 0.0
        %500 = vmatprep.subr.mxu0 0.0
        %501 = vmatpush1.msra.mxu0 0.0
        %502 = vmatprep.subr.mxu0 0.0
        %503 = vmatpush1.msra.mxu0 0.0
        %504 = vmatprep.subr.mxu0 0.0
        %505 = vmatpush1.msra.mxu0 0.0
        %506 = vmatprep.subr.mxu0 0.0
        %507 = vmatpush1.msra.mxu0 0.0
        %508 = vmatprep.subr.mxu0 0.0
        %509 = vmatpush1.msra.mxu0 0.0
        %510 = vmatprep.subr.mxu0 0.0
        %511 = vmatpush1.msra.mxu0 0.0
        %512 = vmatprep.subr.mxu0 0.0
        %513 = vmatpush1.msra.mxu0 0.0
        %514 = vmatprep.subr.mxu0 0.0
        %515 = vmatpush1.msra.mxu0 0.0
        %516 = vmatprep.subr.mxu0 0.0
        %517 = vmatpush1.msra.mxu0 0.0
        %518 = vmatprep.subr.mxu0 0.0
        %519 = vmatpush1.msra.mxu0 0.0
        %520 = vmatprep.subr.mxu0 0.0
        %521 = vmatpush1.msra.mxu0 0.0
        %522 = vmatprep.subr.mxu0 0.0
        %523 = vmatpush1.msra.mxu0 0.0
        %524 = vmatprep.subr.mxu0 0.0
        %525 = vmatpush1.msra.mxu0 0.0
        %526 = vmatprep.subr.mxu0 0.0
        %527 = vmatpush1.msra.mxu0 0.0
        %528 = vmatprep.mubr.f32.mxu0 0.0
        %529 = vmatmul.mubr.f32.gmra.mrb[0].mxu0 %v462
        %v530 = vpop.f32.mrb[0].mxu0
        %v531 = vadd.f32 %v456, %v530
        %v532 = vpop.f32.mrb[0].mxu0
        %v533 = vadd.f32 %v458, %v532
        %534 = vdwg.mxu0
        %v536 = vlaneseq
        %v537 = vshrl.u32 %v536, 7
        %v538 = vsub.s32 0, %v537
        %v539 = vrot.slane %v362, %v538
        %v540 = vlaneseq
        %v541 = vshrl.u32 %v540, 7
        %v542 = vsub.s32 1, %v541
        %v543 = vrot.slane %v362, %v542
        %v546 = vadd.f32 %v531, %v539
        %v547 = vadd.f32 %v533, %v543
        %548 = vadd.xlane.f32.xlu0 %v546
        %v549 = vpop.xlane.xlu0 %548
        %v550 = vmul.f32 %v549, 0.03125
        %v551 = vsub.f32 %v546, %v550
        %v552 = vmul.f32 %v551, %v372
        %v553 = vmul.f32 %v552, %v552
        %554 = vadd.xlane.f32.xlu0 %v553
        %v555 = vpop.xlane.xlu0 %554
        %v556 = vmul.f32 %v555, 0.03125
        %v557 = vadd.f32 %v556, 1e-05
        %v558 = vrsqrt.pop %v557
        %v559 = vmul.f32 %v552, %v558
        %v560 = vmul.f32 %v559, %v363
        %v561 = vadd.f32 %v560, %v364
        %v562 = vmax.f32 %v561, 0.0
        %v563 = vld [vmem:[#allocation10] sm:$0xff]
        %v564 = vld [vmem:[#allocation10 + $0x8] sm:$0xff]
        %v565 = vld [vmem:[#allocation10 + $0x10] sm:$0xff]
        %v566 = vld [vmem:[#allocation10 + $0x18] sm:$0xff]
        %v567 = vld [vmem:[#allocation10 + $0x20] sm:$0xff]
        %v568 = vld [vmem:[#allocation10 + $0x28] sm:$0xff]
        %v569 = vld [vmem:[#allocation10 + $0x30] sm:$0xff]
        %v570 = vld [vmem:[#allocation10 + $0x38] sm:$0xff]
        %v571 = vld [vmem:[#allocation10 + $0x40] sm:$0xff]
        %v572 = vld [vmem:[#allocation10 + $0x48] sm:$0xff]
        %v573 = vld [vmem:[#allocation10 + $0x50] sm:$0xff]
        %v574 = vld [vmem:[#allocation10 + $0x58] sm:$0xff]
        %v575 = vld [vmem:[#allocation10 + $0x60] sm:$0xff]
        %v576 = vld [vmem:[#allocation10 + $0x68] sm:$0xff]
        %v577 = vld [vmem:[#allocation10 + $0x70] sm:$0xff]
        %v578 = vld [vmem:[#allocation10 + $0x78] sm:$0xff]
        %579 = vmatprep.subr.mxu0 0.0
        %580 = vmatpush1.msra.mxu0 %v563
        %581 = vmatprep.subr.mxu0 0.0
        %582 = vmatpush1.msra.mxu0 %v564
        %583 = vmatprep.subr.mxu0 0.0
        %584 = vmatpush1.msra.mxu0 %v565
        %585 = vmatprep.subr.mxu0 0.0
        %586 = vmatpush1.msra.mxu0 %v566
        %587 = vmatprep.subr.mxu0 0.0
        %588 = vmatpush1.msra.mxu0 %v567
        %589 = vmatprep.subr.mxu0 0.0
        %590 = vmatpush1.msra.mxu0 %v568
        %591 = vmatprep.subr.mxu0 0.0
        %592 = vmatpush1.msra.mxu0 %v569
        %593 = vmatprep.subr.mxu0 0.0
        %594 = vmatpush1.msra.mxu0 %v570
        %595 = vmatprep.subr.mxu0 0.0
        %596 = vmatpush1.msra.mxu0 %v571
        %597 = vmatprep.subr.mxu0 0.0
        %598 = vmatpush1.msra.mxu0 %v572
        %599 = vmatprep.subr.mxu0 0.0
        %600 = vmatpush1.msra.mxu0 %v573
        %601 = vmatprep.subr.mxu0 0.0
        %602 = vmatpush1.msra.mxu0 %v574
        %603 = vmatprep.subr.mxu0 0.0
        %604 = vmatpush1.msra.mxu0 %v575
        %605 = vmatprep.subr.mxu0 0.0
        %606 = vmatpush1.msra.mxu0 %v576
        %607 = vmatprep.subr.mxu0 0.0
        %608 = vmatpush1.msra.mxu0 %v577
        %609 = vmatprep.subr.mxu0 0.0
        %610 = vmatpush1.msra.mxu0 %v578
        %611 = vmatprep.subr.mxu0 0.0
        %612 = vmatpush1.msra.mxu0 0.0
        %613 = vmatprep.subr.mxu0 0.0
        %614 = vmatpush1.msra.mxu0 0.0
        %615 = vmatprep.subr.mxu0 0.0
        %616 = vmatpush1.msra.mxu0 0.0
        %617 = vmatprep.subr.mxu0 0.0
        %618 = vmatpush1.msra.mxu0 0.0
        %619 = vmatprep.subr.mxu0 0.0
        %620 = vmatpush1.msra.mxu0 0.0
        %621 = vmatprep.subr.mxu0 0.0
        %622 = vmatpush1.msra.mxu0 0.0
        %623 = vmatprep.subr.mxu0 0.0
        %624 = vmatpush1.msra.mxu0 0.0
        %625 = vmatprep.subr.mxu0 0.0
        %626 = vmatpush1.msra.mxu0 0.0
        %627 = vmatprep.subr.mxu0 0.0
        %628 = vmatpush1.msra.mxu0 0.0
        %629 = vmatprep.subr.mxu0 0.0
        %630 = vmatpush1.msra.mxu0 0.0
        %631 = vmatprep.subr.mxu0 0.0
        %632 = vmatpush1.msra.mxu0 0.0
        %633 = vmatprep.subr.mxu0 0.0
        %634 = vmatpush1.msra.mxu0 0.0
        %635 = vmatprep.subr.mxu0 0.0
        %636 = vmatpush1.msra.mxu0 0.0
        %637 = vmatprep.subr.mxu0 0.0
        %638 = vmatpush1.msra.mxu0 0.0
        %639 = vmatprep.subr.mxu0 0.0
        %640 = vmatpush1.msra.mxu0 0.0
        %641 = vmatprep.subr.mxu0 0.0
        %642 = vmatpush1.msra.mxu0 0.0
        %643 = vmatprep.mubr.f32.mxu0 0.0
        %644 = vmatmul.mubr.f32.gmra.mrb[0].mxu0 %v562
        %v645 = vpop.f32.mrb[0].mxu0
        %v646 = vadd.f32 %v365, %v645
        %v647 = vpop.f32.mrb[0].mxu0
        %648 = vdwg.mxu0
        %649 = vadd.xlane.f32.xlu0 %v646
        %v650 = vpop.xlane.xlu0 %649
        %v651 = vmul.f32 %v650, 0.03125
        %v652 = vsub.f32 %v646, %v651
        %v653 = vmul.f32 %v652, %v372
        %v654 = vmul.f32 %v653, %v653
        %655 = vadd.xlane.f32.xlu0 %v654
        %v656 = vpop.xlane.xlu0 %655
        %v657 = vmul.f32 %v656, 0.03125
        %v658 = vadd.f32 %v657, 1e-05
        %v659 = vrsqrt.pop %v658
        %v660 = vmul.f32 %v653, %v659
        %v661 = vmul.f32 %v660, %v366
        %v662 = vadd.f32 %v661, %v367
        %v663 = vadd.f32 %v662, %v547
        %v664 = vmax.f32 %v663, 0.0
        %665 = vst [vmem:[%s359] sm:$0xff] %v664
        %s666 = sand.u32 %s172, 1
        %s667 = scalar_lea.sflag [#allocation4], %s666
        %s668 = sand.u32 %s172, 1
        %s669 = smul.addr %s668, 8
        %s670 = scalar_lea.vmem [#allocation13], %s669
        // Predicated region
        $region69: #{tpu_custom_call.1} parent=43 // pred_check
          %p671 = pneg %p182
        $region70: #{tpu_custom_call.1} parent=43 // pred_check_branch
          %673 = sbr.rel (%p671) target = $region72
        $region71: #{tpu_custom_call.1} parent=43 // pred_region
          %s675 = ssub.s32 128, 128
          %676 = vsyncadd %s667, %s675
          %s677 = smul.addr %s28, 128
          %s678 = scalar_lea.hbm %s6, %s677
          %s680 = sshll.u32 %s670, 4
          %s681 = int_to_ptr.vmem [resolvable:$true] %s680
          %683 = dma.vmem_to_hbm [thread:$0]  %s681, 128, %s678, %s667
        $region72: #{tpu_custom_call.1} parent=43 // pred_fallthru
          _
      $region44: #{tpu_custom_call.1} parent=5 // pred_fallthru
        _
      %p684 = scmp.le.s32.totalorder 2, %s23
      // Predicated region
      $region73: #{tpu_custom_call.1} parent=5 // pred_check
        %p685 = pneg %p684
      $region74: #{tpu_custom_call.1} parent=5 // pred_check_branch
        %687 = sbr.rel (%p685) target = $region76
      $region75: #{tpu_custom_call.1} parent=5 // pred_region
        %s688 = ssub.s32 %s23, 2
        // Predicated region
        $region77: #{tpu_custom_call.1} parent=75 // pred_check
          %p689 = pneg %p188
        $region78: #{tpu_custom_call.1} parent=75 // pred_check_branch
          %691 = sbr.rel (%p689) target = $region80
        $region79: #{tpu_custom_call.1} parent=75 // pred_region
          %s692 = sand.u32 %s173, 1
          %s693 = scalar_lea.sflag [#allocation4], %s692
          %s694 = sand.u32 %s173, 1
          %s695 = smul.addr %s694, 8
          %s696 = scalar_lea.vmem [#allocation13], %s695
          %697 = dma.done %s693, 128
        $region80: #{tpu_custom_call.1} parent=75 // pred_fallthru
          _
      $region76: #{tpu_custom_call.1} parent=5 // pred_fallthru
        _
    $region6: #{tpu_custom_call.1} parent=1 // loop_footer
      %s27 = sadd.s32 1, %s23
    $region7: #{tpu_custom_call.1} parent=1 // loop_footer_branch
      %22 = sbr.rel target = $region3
    $region8: #{tpu_custom_call.1} parent=1 // loop_exit
      _
    %698 = vsyncpa [#allocation3], 1
    %s699 = scalar_lea.sflag [#allocation3], 1
    %700 = vsyncpa %s699, 1
    %701 = vsyncpa [#allocation6], 1
    %s702 = scalar_lea.sflag [#allocation6], 1
    %703 = vsyncpa %s702, 1
    %704 = vsyncpa [#allocation9], 1
    %705 = vsyncpa [#allocation12], 1
    %706 = vsyncpa [#allocation4], 1
    %s707 = scalar_lea.sflag [#allocation4], 1
    %708 = vsyncpa %s707, 1

</llo_original>
